<compile_context>
chip_gen: v6e
topology: v6e:2x2x1
jax: 0.10.0
libtpu: 0.0.40
codegen_flags: <defaults>
</compile_context>

<pallas_src>
import functools

import jax
import jax.numpy as jnp
from jax import lax
from jax.experimental import pallas as pl
from jax.experimental.pallas import tpu as pltpu

EPS = 1e-5


def _make_resnet_block_kernel(C, H, W, matmul_dtype):
    HW = H * W

    def shifted_taps(h, is_col0, is_colL, is_row0, is_rowL):
        """h: (C, HW). Returns the 9 reflect-padded 3x3 taps stacked -> (9C, HW).

        All shifts are lane rotations on the flattened spatial axis; reflect
        boundary rows/cols are patched with jnp.where selects.  Tap order is
        dy-major, dx-minor, matching the (C, 9C) weight repack in the wrapper.
        """
        # Vertical (row) shifts: a whole row = W lanes.
        up = pltpu.roll(h, W, axis=1)            # h[p - W]  -> row y-1 at row y
        down = pltpu.roll(h, HW - W, axis=1)     # h[p + W]  -> row y+1 at row y
        y_m1 = jnp.where(is_row0, down, up)      # row y-1, reflect at y=0   -> row 1
        y_p1 = jnp.where(is_rowL, up, down)      # row y+1, reflect at y=H-1 -> row H-2

        taps = []
        for ys in (y_m1, h, y_p1):               # dy = 0, 1, 2
            left = pltpu.roll(ys, 1, axis=1)         # col x-1 at col x
            right = pltpu.roll(ys, HW - 1, axis=1)   # col x+1 at col x
            x_m1 = jnp.where(is_col0, right, left)   # reflect at x=0   -> col 1
            x_p1 = jnp.where(is_colL, left, right)   # reflect at x=W-1 -> col W-2
            taps += [x_m1, ys, x_p1]             # dx = 0, 1, 2
        return jnp.concatenate(taps, axis=0)     # (9C, HW)

    def conv3x3(h, w_ref, b_ref, masks):
        """Reflect-padded 3x3 conv as one im2col MXU matmul -> f32 (C, HW)."""
        # Single narrow cast BEFORE the tap build so rolls / selects / concat
        # all move half-width data on the bf16 path (numerically identical:
        # selects/rolls do no arithmetic).
        hm = h.astype(matmul_dtype)
        stk = shifted_taps(hm, *masks)                           # (9C, HW)
        acc = jnp.dot(w_ref[...], stk,
                      preferred_element_type=jnp.float32)        # (C, HW) f32
        return acc + b_ref[...]                                  # bias (C, 1)

    def instance_norm(y):
        """InstanceNorm2d(affine=False, eps=1e-5) on (C, HW)."""
        mean = jnp.mean(y, axis=1, keepdims=True)                # XLU reduce
        d = y - mean
        var = jnp.mean(d * d, axis=1, keepdims=True)             # two-pass var
        return d * lax.rsqrt(var + EPS)                          # EUP rsqrt

    def kernel(x_ref, w1_ref, b1_ref, w2_ref, b2_ref, o_ref):
        x = x_ref[...].astype(jnp.float32)                       # (C, HW)

        # Reflect-boundary masks: computed once per grid step, reused by both
        # convs.  Cheap VPU filler (iota + compare; % W is an AND for pow2 W).
        idx = lax.broadcasted_iota(jnp.int32, (1, HW), 1)
        col = idx % W
        masks = (col == 0, col == W - 1, idx < W, idx >= HW - W)

        # First half: reflect pad -> conv3x3 -> IN -> ReLU.
        h = conv3x3(x, w1_ref, b1_ref, masks)
        h = jnp.maximum(instance_norm(h), 0.0)
        # TODO(synk): use_dropout=False in this config; nn.Dropout(0.5) omitted.

        # Second half: reflect pad -> conv3x3 -> IN, then the skip connection.
        h2 = instance_norm(conv3x3(h, w2_ref, b2_ref, masks))
        o_ref[...] = (x + h2).astype(o_ref.dtype)

    return kernel


@functools.partial(jax.jit, static_argnames=("matmul_dtype",))
def resnet_block_forward(x, w1, b1, w2, b2, *, matmul_dtype=jnp.float32):
    """x: (B, C, H, W) f32; w*: (C, C, 3, 3); b*: (C,). Returns (B, C, H, W)."""
    B, C, H, W = x.shape
    HW = H * W

    # Lane-dense layout: flatten spatial so HW sits on the 128-wide lane axis.
    x_flat = x.reshape(B, C, HW)

    # im2col weight repack: (C_out, C_in, 3, 3) -> (C_out, 9*C_in) with the
    # contraction index ordered (dy, dx, c_in) to match the stacked taps.
    w1_m = jnp.transpose(w1, (0, 2, 3, 1)).reshape(C, 9 * C).astype(matmul_dtype)
    w2_m = jnp.transpose(w2, (0, 2, 3, 1)).reshape(C, 9 * C).astype(matmul_dtype)
    b1_c = b1.reshape(C, 1).astype(jnp.float32)
    b2_c = b2.reshape(C, 1).astype(jnp.float32)

    kernel = _make_resnet_block_kernel(C, H, W, matmul_dtype)

    # TODO(synk): for production CUT sizes (C=256, H=W=64) add an H-tile grid
    # axis (halo handled by the same roll/where logic on per-tile rows) so the
    # (9C, HW) tap stack stays under v7x's 64 MiB VMEM and both of its
    # TensorCores are used even when B == 1; for tiny C (this test config,
    # C=4) a VPU broadcast-MAC path would beat the MXU round trip.
    grid_spec = pltpu.PrefetchScalarGridSpec(
        num_scalar_prefetch=0,
        grid=(B,),
        in_specs=[
            pl.BlockSpec((None, C, HW), lambda b: (b, 0, 0)),   # per-image tile
            pl.BlockSpec((C, 9 * C), lambda b: (0, 0)),          # resident weights
            pl.BlockSpec((C, 1), lambda b: (0, 0)),
            pl.BlockSpec((C, 9 * C), lambda b: (0, 0)),
            pl.BlockSpec((C, 1), lambda b: (0, 0)),
        ],
        out_specs=pl.BlockSpec((None, C, HW), lambda b: (b, 0, 0)),
    )

    out_flat = pl.pallas_call(
        kernel,
        out_shape=jax.ShapeDtypeStruct((B, C, HW), x.dtype),
        grid_spec=grid_spec,
        compiler_params=pltpu.CompilerParams(
            dimension_semantics=("parallel",),
            vmem_limit_bytes=48 * 1024 * 1024,   # headroom under v7x 64 MiB
        ),
    )(x_flat, w1_m, b1_c, w2_m, b2_c)

    return out_flat.reshape(B, C, H, W)


def resnet_block_reference(x, w1, b1, w2, b2):
    """Pure-JAX reference mirroring the PyTorch module semantics."""
    def conv(h, w, b):
        hp = jnp.pad(h, ((0, 0), (0, 0), (1, 1), (1, 1)), mode="reflect")
        y = lax.conv_general_dilated(
            hp, w, window_strides=(1, 1), padding="VALID",
            dimension_numbers=("NCHW", "OIHW", "NCHW"))
        return y + b.reshape(1, -1, 1, 1)

    def inorm(y):
        mean = jnp.mean(y, axis=(2, 3), keepdims=True)
        var = jnp.mean((y - mean) ** 2, axis=(2, 3), keepdims=True)
        return (y - mean) * lax.rsqrt(var + EPS)

    h = jnp.maximum(inorm(conv(x, w1, b1)), 0.0)
    h = inorm(conv(h, w2, b2))
    return x + h


if __name__ == "__main__":
    B, C, H, W = 2, 4, 16, 16   # dim=4, spatial=16

    key = jax.random.PRNGKey(0)
    kx, kw1, kb1, kw2, kb2 = jax.random.split(key, 5)

    x = jax.random.normal(kx, (B, C, H, W), dtype=jnp.float32)
    w1 = 0.1 * jax.random.normal(kw1, (C, C, 3, 3), dtype=jnp.float32)
    b1 = 0.1 * jax.random.normal(kb1, (C,), dtype=jnp.float32)
    w2 = 0.1 * jax.random.normal(kw2, (C, C, 3, 3), dtype=jnp.float32)
    b2 = 0.1 * jax.random.normal(kb2, (C,), dtype=jnp.float32)

    ref = jax.block_until_ready(resnet_block_reference(x, w1, b1, w2, b2))

    # f32 matmul path: bit-for-bit module semantics, tight tolerance.
    out = jax.block_until_ready(resnet_block_forward(x, w1, b1, w2, b2))
    assert out.shape == (B, C, H, W)
    err = float(jnp.max(jnp.abs(out - ref)))
    assert jnp.allclose(out, ref, atol=1e-4, rtol=1e-4), err

    # bf16 matmul path (production throughput variant): looser tolerance.
    out_bf16 = jax.block_until_ready(
        resnet_block_forward(x, w1, b1, w2, b2, matmul_dtype=jnp.bfloat16))
    err_bf16 = float(jnp.max(jnp.abs(out_bf16 - ref)))
    assert jnp.allclose(out_bf16, ref, atol=1e-1, rtol=1e-1), err_bf16

    print("KERNEL_OK")
</pallas_src>

<mosaic_0001>
module attributes {stable_mosaic.version = 11 : i64} {
  func.func @kernel(%arg0: i32, %arg1: memref<1x4x256xf32, #tpu.memory_space<vmem>>, %arg2: memref<4x36xf32, #tpu.memory_space<vmem>>, %arg3: memref<4x1xf32, #tpu.memory_space<vmem>>, %arg4: memref<4x36xf32, #tpu.memory_space<vmem>>, %arg5: memref<4x1xf32, #tpu.memory_space<vmem>>, %arg6: memref<1x4x256xf32, #tpu.memory_space<vmem>>) attributes {dimension_semantics = [#tpu.dimension_semantics<parallel>], iteration_bounds = array<i64: 2>, scalar_prefetch = 0 : i64, scratch_operands = 0 : i64, tpu.core_type = #tpu.core_type<tc>, window_params = [{transform_indices = @transform_0, window_bounds = array<i64: 1, 4, 256>}, {pipeline_mode = #tpu.pipeline_mode<synchronous>, transform_indices = @transform_1, window_bounds = array<i64: 4, 36>}, {pipeline_mode = #tpu.pipeline_mode<synchronous>, transform_indices = @transform_2, window_bounds = array<i64: 4, 1>}, {pipeline_mode = #tpu.pipeline_mode<synchronous>, transform_indices = @transform_3, window_bounds = array<i64: 4, 36>}, {pipeline_mode = #tpu.pipeline_mode<synchronous>, transform_indices = @transform_4, window_bounds = array<i64: 4, 1>}, {transform_indices = @transform_5, window_bounds = array<i64: 1, 4, 256>}]} {
    %c0 = arith.constant 0 : index
    %c0_0 = arith.constant 0 : index
    %c0_1 = arith.constant 0 : index
    %0 = vector.load %arg1[%c0, %c0_0, %c0_1] : memref<1x4x256xf32, #tpu.memory_space<vmem>>, vector<1x4x256xf32>
    %1 = vector.shape_cast %0 : vector<1x4x256xf32> to vector<4x256xf32>
    %2 = tpu.iota {dimensions = array<i32: 1>} : vector<1x256xi32>
    %c16_i32 = arith.constant 16 : i32
    %c0_i32 = arith.constant 0 : i32
    %3 = arith.cmpi eq, %c16_i32, %c0_i32 : i32
    %c1_i32 = arith.constant 1 : i32
    %4 = arith.select %3, %c1_i32, %c16_i32 : i32
    %5 = vector.broadcast %4 : i32 to vector<1x256xi32>
    %6 = arith.remsi %2, %5 : vector<1x256xi32>
    %c0_i32_2 = arith.constant 0 : i32
    %7 = vector.broadcast %c0_i32_2 : i32 to vector<1x256xi32>
    %8 = arith.cmpi ne, %6, %7 : vector<1x256xi32>
    %c0_i32_3 = arith.constant 0 : i32
    %9 = vector.broadcast %c0_i32_3 : i32 to vector<1x256xi32>
    %10 = arith.cmpi slt, %6, %9 : vector<1x256xi32>
    %c0_i32_4 = arith.constant 0 : i32
    %11 = arith.cmpi slt, %4, %c0_i32_4 : i32
    %12 = vector.broadcast %11 : i1 to vector<1x256xi1>
    %13 = vector.broadcast %12 : vector<1x256xi1> to vector<1x256xi1>
    %14 = arith.xori %10, %13 : vector<1x256xi1>
    %15 = arith.andi %14, %8 : vector<1x256xi1>
    %16 = vector.broadcast %4 : i32 to vector<1x256xi32>
    %17 = arith.addi %6, %16 : vector<1x256xi32>
    %18 = arith.select %15, %17, %6 : vector<1x256xi1>, vector<1x256xi32>
    %c0_i32_5 = arith.constant 0 : i32
    %19 = vector.broadcast %c0_i32_5 : i32 to vector<1x256xi32>
    %20 = arith.cmpi eq, %18, %19 : vector<1x256xi32>
    %c15_i32 = arith.constant 15 : i32
    %21 = vector.broadcast %c15_i32 : i32 to vector<1x256xi32>
    %22 = arith.cmpi eq, %18, %21 : vector<1x256xi32>
    %c16_i32_6 = arith.constant 16 : i32
    %23 = vector.broadcast %c16_i32_6 : i32 to vector<1x256xi32>
    %24 = arith.cmpi slt, %2, %23 : vector<1x256xi32>
    %c240_i32 = arith.constant 240 : i32
    %25 = vector.broadcast %c240_i32 : i32 to vector<1x256xi32>
    %26 = arith.cmpi sge, %2, %25 : vector<1x256xi32>
    %c16_i32_7 = arith.constant 16 : i32
    %27 = tpu.dynamic_rotate %1 by %c16_i32_7 dim 1 : vector<4x256xf32>, i32 -> vector<4x256xf32>
    %c240_i32_8 = arith.constant 240 : i32
    %28 = tpu.dynamic_rotate %1 by %c240_i32_8 dim 1 : vector<4x256xf32>, i32 -> vector<4x256xf32>
    %29 = vector.shape_cast %24 : vector<1x256xi1> to vector<1x256xi1>
    %30 = vector.broadcast %29 : vector<1x256xi1> to vector<4x256xi1>
    %31 = arith.select %30, %28, %27 : vector<4x256xi1>, vector<4x256xf32>
    %32 = vector.shape_cast %26 : vector<1x256xi1> to vector<1x256xi1>
    %33 = vector.broadcast %32 : vector<1x256xi1> to vector<4x256xi1>
    %34 = arith.select %33, %27, %28 : vector<4x256xi1>, vector<4x256xf32>
    %c1_i32_9 = arith.constant 1 : i32
    %35 = tpu.dynamic_rotate %31 by %c1_i32_9 dim 1 : vector<4x256xf32>, i32 -> vector<4x256xf32>
    %c255_i32 = arith.constant 255 : i32
    %36 = tpu.dynamic_rotate %31 by %c255_i32 dim 1 : vector<4x256xf32>, i32 -> vector<4x256xf32>
    %37 = vector.shape_cast %20 : vector<1x256xi1> to vector<1x256xi1>
    %38 = vector.broadcast %37 : vector<1x256xi1> to vector<4x256xi1>
    %39 = arith.select %38, %36, %35 : vector<4x256xi1>, vector<4x256xf32>
    %40 = vector.shape_cast %22 : vector<1x256xi1> to vector<1x256xi1>
    %41 = vector.broadcast %40 : vector<1x256xi1> to vector<4x256xi1>
    %42 = arith.select %41, %35, %36 : vector<4x256xi1>, vector<4x256xf32>
    %c1_i32_10 = arith.constant 1 : i32
    %43 = tpu.dynamic_rotate %1 by %c1_i32_10 dim 1 : vector<4x256xf32>, i32 -> vector<4x256xf32>
    %c255_i32_11 = arith.constant 255 : i32
    %44 = tpu.dynamic_rotate %1 by %c255_i32_11 dim 1 : vector<4x256xf32>, i32 -> vector<4x256xf32>
    %45 = vector.shape_cast %20 : vector<1x256xi1> to vector<1x256xi1>
    %46 = vector.broadcast %45 : vector<1x256xi1> to vector<4x256xi1>
    %47 = arith.select %46, %44, %43 : vector<4x256xi1>, vector<4x256xf32>
    %48 = vector.shape_cast %22 : vector<1x256xi1> to vector<1x256xi1>
    %49 = vector.broadcast %48 : vector<1x256xi1> to vector<4x256xi1>
    %50 = arith.select %49, %43, %44 : vector<4x256xi1>, vector<4x256xf32>
    %c1_i32_12 = arith.constant 1 : i32
    %51 = tpu.dynamic_rotate %34 by %c1_i32_12 dim 1 : vector<4x256xf32>, i32 -> vector<4x256xf32>
    %c255_i32_13 = arith.constant 255 : i32
    %52 = tpu.dynamic_rotate %34 by %c255_i32_13 dim 1 : vector<4x256xf32>, i32 -> vector<4x256xf32>
    %53 = vector.shape_cast %20 : vector<1x256xi1> to vector<1x256xi1>
    %54 = vector.broadcast %53 : vector<1x256xi1> to vector<4x256xi1>
    %55 = arith.select %54, %52, %51 : vector<4x256xi1>, vector<4x256xf32>
    %56 = vector.shape_cast %22 : vector<1x256xi1> to vector<1x256xi1>
    %57 = vector.broadcast %56 : vector<1x256xi1> to vector<4x256xi1>
    %58 = arith.select %57, %51, %52 : vector<4x256xi1>, vector<4x256xf32>
    %59 = tpu.concatenate %39, %31, %42, %47, %1, %50, %55, %34, %58 in 0 : vector<4x256xf32>, vector<4x256xf32>, vector<4x256xf32>, vector<4x256xf32>, vector<4x256xf32>, vector<4x256xf32>, vector<4x256xf32>, vector<4x256xf32>, vector<4x256xf32> -> vector<36x256xf32>
    %c0_14 = arith.constant 0 : index
    %c0_15 = arith.constant 0 : index
    %60 = vector.load %arg2[%c0_14, %c0_15] : memref<4x36xf32, #tpu.memory_space<vmem>>, vector<4x36xf32>
    %cst = arith.constant dense<0.000000e+00> : vector<4x256xf32>
    %61 = tpu.matmul %60, %59, %cst {dimension_numbers = #tpu.dot_dimension_numbers<[1], [0], [0], [1], [0, 0, 1, 1], [], []>} : vector<4x36xf32>, vector<36x256xf32>, vector<4x256xf32> -> vector<4x256xf32>
    %c0_16 = arith.constant 0 : index
    %c0_17 = arith.constant 0 : index
    %62 = vector.load %arg3[%c0_16, %c0_17] : memref<4x1xf32, #tpu.memory_space<vmem>>, vector<4x1xf32>
    %63 = vector.broadcast %62 : vector<4x1xf32> to vector<4x256xf32>
    %64 = arith.addf %61, %63 : vector<4x256xf32>
    %cst_18 = arith.constant dense<0.000000e+00> : vector<4xf32>
    %65 = vector.multi_reduction <add>, %64, %cst_18 [1] : vector<4x256xf32> to vector<4xf32>
    %66 = vector.shape_cast %65 : vector<4xf32> to vector<4x1xf32>
    %cst_19 = arith.constant 2.560000e+02 : f32
    %67 = vector.broadcast %cst_19 : f32 to vector<4x1xf32>
    %68 = arith.divf %66, %67 : vector<4x1xf32>
    %69 = vector.broadcast %68 : vector<4x1xf32> to vector<4x256xf32>
    %70 = arith.subf %64, %69 : vector<4x256xf32>
    %71 = arith.mulf %70, %70 : vector<4x256xf32>
    %cst_20 = arith.constant dense<0.000000e+00> : vector<4xf32>
    %72 = vector.multi_reduction <add>, %71, %cst_20 [1] : vector<4x256xf32> to vector<4xf32>
    %73 = vector.shape_cast %72 : vector<4xf32> to vector<4x1xf32>
    %cst_21 = arith.constant 2.560000e+02 : f32
    %74 = vector.broadcast %cst_21 : f32 to vector<4x1xf32>
    %75 = arith.divf %73, %74 : vector<4x1xf32>
    %cst_22 = arith.constant 9.99999974E-6 : f32
    %76 = vector.broadcast %cst_22 : f32 to vector<4x1xf32>
    %77 = arith.addf %75, %76 : vector<4x1xf32>
    %78 = math.rsqrt %77 : vector<4x1xf32>
    %79 = vector.broadcast %78 : vector<4x1xf32> to vector<4x256xf32>
    %80 = arith.mulf %70, %79 : vector<4x256xf32>
    %cst_23 = arith.constant 0.000000e+00 : f32
    %81 = vector.broadcast %cst_23 : f32 to vector<4x256xf32>
    %82 = arith.maximumf %80, %81 : vector<4x256xf32>
    %c16_i32_24 = arith.constant 16 : i32
    %83 = tpu.dynamic_rotate %82 by %c16_i32_24 dim 1 : vector<4x256xf32>, i32 -> vector<4x256xf32>
    %c240_i32_25 = arith.constant 240 : i32
    %84 = tpu.dynamic_rotate %82 by %c240_i32_25 dim 1 : vector<4x256xf32>, i32 -> vector<4x256xf32>
    %85 = vector.shape_cast %24 : vector<1x256xi1> to vector<1x256xi1>
    %86 = vector.broadcast %85 : vector<1x256xi1> to vector<4x256xi1>
    %87 = arith.select %86, %84, %83 : vector<4x256xi1>, vector<4x256xf32>
    %88 = vector.shape_cast %26 : vector<1x256xi1> to vector<1x256xi1>
    %89 = vector.broadcast %88 : vector<1x256xi1> to vector<4x256xi1>
    %90 = arith.select %89, %83, %84 : vector<4x256xi1>, vector<4x256xf32>
    %c1_i32_26 = arith.constant 1 : i32
    %91 = tpu.dynamic_rotate %87 by %c1_i32_26 dim 1 : vector<4x256xf32>, i32 -> vector<4x256xf32>
    %c255_i32_27 = arith.constant 255 : i32
    %92 = tpu.dynamic_rotate %87 by %c255_i32_27 dim 1 : vector<4x256xf32>, i32 -> vector<4x256xf32>
    %93 = vector.shape_cast %20 : vector<1x256xi1> to vector<1x256xi1>
    %94 = vector.broadcast %93 : vector<1x256xi1> to vector<4x256xi1>
    %95 = arith.select %94, %92, %91 : vector<4x256xi1>, vector<4x256xf32>
    %96 = vector.shape_cast %22 : vector<1x256xi1> to vector<1x256xi1>
    %97 = vector.broadcast %96 : vector<1x256xi1> to vector<4x256xi1>
    %98 = arith.select %97, %91, %92 : vector<4x256xi1>, vector<4x256xf32>
    %c1_i32_28 = arith.constant 1 : i32
    %99 = tpu.dynamic_rotate %82 by %c1_i32_28 dim 1 : vector<4x256xf32>, i32 -> vector<4x256xf32>
    %c255_i32_29 = arith.constant 255 : i32
    %100 = tpu.dynamic_rotate %82 by %c255_i32_29 dim 1 : vector<4x256xf32>, i32 -> vector<4x256xf32>
    %101 = vector.shape_cast %20 : vector<1x256xi1> to vector<1x256xi1>
    %102 = vector.broadcast %101 : vector<1x256xi1> to vector<4x256xi1>
    %103 = arith.select %102, %100, %99 : vector<4x256xi1>, vector<4x256xf32>
    %104 = vector.shape_cast %22 : vector<1x256xi1> to vector<1x256xi1>
    %105 = vector.broadcast %104 : vector<1x256xi1> to vector<4x256xi1>
    %106 = arith.select %105, %99, %100 : vector<4x256xi1>, vector<4x256xf32>
    %c1_i32_30 = arith.constant 1 : i32
    %107 = tpu.dynamic_rotate %90 by %c1_i32_30 dim 1 : vector<4x256xf32>, i32 -> vector<4x256xf32>
    %c255_i32_31 = arith.constant 255 : i32
    %108 = tpu.dynamic_rotate %90 by %c255_i32_31 dim 1 : vector<4x256xf32>, i32 -> vector<4x256xf32>
    %109 = vector.shape_cast %20 : vector<1x256xi1> to vector<1x256xi1>
    %110 = vector.broadcast %109 : vector<1x256xi1> to vector<4x256xi1>
    %111 = arith.select %110, %108, %107 : vector<4x256xi1>, vector<4x256xf32>
    %112 = vector.shape_cast %22 : vector<1x256xi1> to vector<1x256xi1>
    %113 = vector.broadcast %112 : vector<1x256xi1> to vector<4x256xi1>
    %114 = arith.select %113, %107, %108 : vector<4x256xi1>, vector<4x256xf32>
    %115 = tpu.concatenate %95, %87, %98, %103, %82, %106, %111, %90, %114 in 0 : vector<4x256xf32>, vector<4x256xf32>, vector<4x256xf32>, vector<4x256xf32>, vector<4x256xf32>, vector<4x256xf32>, vector<4x256xf32>, vector<4x256xf32>, vector<4x256xf32> -> vector<36x256xf32>
    %c0_32 = arith.constant 0 : index
    %c0_33 = arith.constant 0 : index
    %116 = vector.load %arg4[%c0_32, %c0_33] : memref<4x36xf32, #tpu.memory_space<vmem>>, vector<4x36xf32>
    %cst_34 = arith.constant dense<0.000000e+00> : vector<4x256xf32>
    %117 = tpu.matmul %116, %115, %cst_34 {dimension_numbers = #tpu.dot_dimension_numbers<[1], [0], [0], [1], [0, 0, 1, 1], [], []>} : vector<4x36xf32>, vector<36x256xf32>, vector<4x256xf32> -> vector<4x256xf32>
    %c0_35 = arith.constant 0 : index
    %c0_36 = arith.constant 0 : index
    %118 = vector.load %arg5[%c0_35, %c0_36] : memref<4x1xf32, #tpu.memory_space<vmem>>, vector<4x1xf32>
    %119 = vector.broadcast %118 : vector<4x1xf32> to vector<4x256xf32>
    %120 = arith.addf %117, %119 : vector<4x256xf32>
    %cst_37 = arith.constant dense<0.000000e+00> : vector<4xf32>
    %121 = vector.multi_reduction <add>, %120, %cst_37 [1] : vector<4x256xf32> to vector<4xf32>
    %122 = vector.shape_cast %121 : vector<4xf32> to vector<4x1xf32>
    %cst_38 = arith.constant 2.560000e+02 : f32
    %123 = vector.broadcast %cst_38 : f32 to vector<4x1xf32>
    %124 = arith.divf %122, %123 : vector<4x1xf32>
    %125 = vector.broadcast %124 : vector<4x1xf32> to vector<4x256xf32>
    %126 = arith.subf %120, %125 : vector<4x256xf32>
    %127 = arith.mulf %126, %126 : vector<4x256xf32>
    %cst_39 = arith.constant dense<0.000000e+00> : vector<4xf32>
    %128 = vector.multi_reduction <add>, %127, %cst_39 [1] : vector<4x256xf32> to vector<4xf32>
    %129 = vector.shape_cast %128 : vector<4xf32> to vector<4x1xf32>
    %cst_40 = arith.constant 2.560000e+02 : f32
    %130 = vector.broadcast %cst_40 : f32 to vector<4x1xf32>
    %131 = arith.divf %129, %130 : vector<4x1xf32>
    %cst_41 = arith.constant 9.99999974E-6 : f32
    %132 = vector.broadcast %cst_41 : f32 to vector<4x1xf32>
    %133 = arith.addf %131, %132 : vector<4x1xf32>
    %134 = math.rsqrt %133 : vector<4x1xf32>
    %135 = vector.broadcast %134 : vector<4x1xf32> to vector<4x256xf32>
    %136 = arith.mulf %126, %135 : vector<4x256xf32>
    %137 = arith.addf %1, %136 : vector<4x256xf32>
    %c0_42 = arith.constant 0 : index
    %c0_43 = arith.constant 0 : index
    %c0_44 = arith.constant 0 : index
    %138 = vector.load %arg6[%c0_42, %c0_43, %c0_44] : memref<1x4x256xf32, #tpu.memory_space<vmem>>, vector<1x4x256xf32>
    %139 = vector.shape_cast %138 : vector<1x4x256xf32> to vector<4x256xf32>
    %140 = vector.shape_cast %137 : vector<4x256xf32> to vector<1x4x256xf32>
    tpu.vector_store %arg6[%c0_42, %c0_43, %c0_44], %140 {strides = array<i32>} : memref<1x4x256xf32, #tpu.memory_space<vmem>>, vector<1x4x256xf32>,
    return
  }
  func.func @transform_0(%arg0: i32) -> (i32, i32, i32) {
    %c0_i32 = arith.constant 0 : i32
    %c0_i32_0 = arith.constant 0 : i32
    %c0_i32_1 = arith.constant 0 : i32
    return %arg0, %c0_i32, %c0_i32_0 : i32, i32, i32
  }
  func.func @transform_1(%arg0: i32) -> (i32, i32) {
    %c0_i32 = arith.constant 0 : i32
    %c0_i32_0 = arith.constant 0 : i32
    %c0_i32_1 = arith.constant 0 : i32
    return %c0_i32, %c0_i32_0 : i32, i32
  }
  func.func @transform_2(%arg0: i32) -> (i32, i32) {
    %c0_i32 = arith.constant 0 : i32
    %c0_i32_0 = arith.constant 0 : i32
    %c0_i32_1 = arith.constant 0 : i32
    return %c0_i32, %c0_i32_0 : i32, i32
  }
  func.func @transform_3(%arg0: i32) -> (i32, i32) {
    %c0_i32 = arith.constant 0 : i32
    %c0_i32_0 = arith.constant 0 : i32
    %c0_i32_1 = arith.constant 0 : i32
    return %c0_i32, %c0_i32_0 : i32, i32
  }
  func.func @transform_4(%arg0: i32) -> (i32, i32) {
    %c0_i32 = arith.constant 0 : i32
    %c0_i32_0 = arith.constant 0 : i32
    %c0_i32_1 = arith.constant 0 : i32
    return %c0_i32, %c0_i32_0 : i32, i32
  }
  func.func @transform_5(%arg0: i32) -> (i32, i32, i32) {
    %c0_i32 = arith.constant 0 : i32
    %c0_i32_0 = arith.constant 0 : i32
    %c0_i32_1 = arith.constant 0 : i32
    return %arg0, %c0_i32, %c0_i32_0 : i32, i32, i32
  }
}

</mosaic_0001>

<llo_original>
// kernel: resnet_block_forward.1
$region0: #{resnet_block_forward.1}
  #allocation0 [shape = 'u32[]', space=smem, size = 0x4, offset = 0x4, fixed_abs, tag = 'smem constant byte address 0x4 - core index']
  #allocation1 [shape = 'u32[144,128]{1,0:T(1,128)}', space=vmem, size = 0x12000, scoped, tag = 'internal scratch']
  %s0 = inlined_call_operand.vmem [shape: f32[2,4,256], index: 0, kind: input, shape index: {}]
  %s1 = inlined_call_operand.vmem [shape: f32[4,36], index: 1, kind: input, shape index: {}]
  %s2 = inlined_call_operand.vmem [shape: f32[4,1], index: 2, kind: input, shape index: {}]
  %s3 = inlined_call_operand.vmem [shape: f32[4,36], index: 3, kind: input, shape index: {}]
  %s4 = inlined_call_operand.vmem [shape: f32[4,1], index: 4, kind: input, shape index: {}]
  %s5 = inlined_call_operand.vmem [shape: f32[2,4,256], index: 5, kind: output, shape index: {}]
  %s6 = sld [smem:[#allocation0]]
  $region53: #{resnet_block_forward.1} parent=0
    _
  %s8 = ssub.s32 1, %s6
  %s9 = scalar_select 0, %s8, %s6
  loop: start=0, step=1, limit=4
  $region2: #{resnet_block_forward.1} parent=0 // loop_pre_header
    _
  $region3: #{resnet_block_forward.1} parent=0 // loop_header
    %s11 = sphi 0, %s15
    %p12 = scmp.ge.s32.totalorder %s11, 4
    %s21 = sphi 0, %s23
    %s24 = sphi 0, %s21
    %s25 = sphi 0, %s24
    %s41 = sphi 0, %s25
    %s45 = sphi 0, %s45
    %s47 = sphi 0, %s45
    %s48 = sphi 0, %s47
    %s62 = sphi 0, %s48
    %s66 = sphi 0, %s66
    %s68 = sphi 0, %s66
    %s69 = sphi 0, %s68
    %s83 = sphi 0, %s69
    %s87 = sphi 0, %s87
    %s89 = sphi 0, %s87
    %s90 = sphi 0, %s89
    %s104 = sphi 0, %s90
    %s108 = sphi 0, %s108
    %s110 = sphi 0, %s108
    %s111 = sphi 0, %s110
    %s125 = sphi 0, %s111
    %s131 = sphi 0, %s133
    %s134 = sphi 0, %s131
    %s135 = sphi 0, %s134
    %s151 = sphi 0, %s135
  $region4: #{resnet_block_forward.1} parent=0 // loop_header_branch
    %14 = sbr.rel (%p12) target = $region8
  $region5: #{resnet_block_forward.1} parent=0 // loop_body
    %s16 = ssub.s32 %s11, 1
    %s17 = ssub.s32 %s11, 2
    %s18 = sadd.s32 %s11, 1
    %s19 = ssub.s32 %s11, %s18
    %p20 = scmp.eq.s32.totalorder %s19, 0
    %s22 = sadd.s32 %s21, 1
    %s23 = scalar_select %p20, %s21, %s22
    %p26 = pneg %p20
    %p27 = scmp.eq.s32.totalorder %s11, 1
    %p28 = por %p26, %p27
    %p29 = scmp.ne.s32.totalorder %s21, %s24
    %p30 = scmp.eq.s32.totalorder %s11, 0
    %p31 = por %p29, %p30
    %p32 = scmp.ne.s32.totalorder %s21, %s24
    %p33 = scmp.eq.s32.totalorder %s16, 1
    %p34 = por %p32, %p33
    %p35 = scmp.ne.s32.totalorder %s24, %s25
    %p36 = scmp.eq.s32.totalorder %s16, 0
    %p37 = por %p35, %p36
    %p38 = scmp.ne.s32.totalorder %s24, %s25
    %p39 = scmp.eq.s32.totalorder %s17, 1
    %p40 = por %p38, %p39
    %p42 = scmp.ne.s32.totalorder %s25, %s41
    %p43 = scmp.eq.s32.totalorder %s17, 0
    %p44 = por %p42, %p43
    %s46 = sadd.s32 %s45, 1
    %p49 = scmp.eq.s32.totalorder %s11, 1
    %p50 = scmp.ne.s32.totalorder %s45, %s47
    %p51 = scmp.eq.s32.totalorder %s11, 0
    %p52 = por %p50, %p51
    %p53 = scmp.ne.s32.totalorder %s45, %s47
    %p54 = scmp.eq.s32.totalorder %s16, 1
    %p55 = por %p53, %p54
    %p56 = scmp.ne.s32.totalorder %s47, %s48
    %p57 = scmp.eq.s32.totalorder %s16, 0
    %p58 = por %p56, %p57
    %p59 = scmp.ne.s32.totalorder %s47, %s48
    %p60 = scmp.eq.s32.totalorder %s17, 1
    %p61 = por %p59, %p60
    %p63 = scmp.ne.s32.totalorder %s48, %s62
    %p64 = scmp.eq.s32.totalorder %s17, 0
    %p65 = por %p63, %p64
    %s67 = sadd.s32 %s66, 1
    %p70 = scmp.eq.s32.totalorder %s11, 1
    %p71 = scmp.ne.s32.totalorder %s66, %s68
    %p72 = scmp.eq.s32.totalorder %s11, 0
    %p73 = por %p71, %p72
    %p74 = scmp.ne.s32.totalorder %s66, %s68
    %p75 = scmp.eq.s32.totalorder %s16, 1
    %p76 = por %p74, %p75
    %p77 = scmp.ne.s32.totalorder %s68, %s69
    %p78 = scmp.eq.s32.totalorder %s16, 0
    %p79 = por %p77, %p78
    %p80 = scmp.ne.s32.totalorder %s68, %s69
    %p81 = scmp.eq.s32.totalorder %s17, 1
    %p82 = por %p80, %p81
    %p84 = scmp.ne.s32.totalorder %s69, %s83
    %p85 = scmp.eq.s32.totalorder %s17, 0
    %p86 = por %p84, %p85
    %s88 = sadd.s32 %s87, 1
    %p91 = scmp.eq.s32.totalorder %s11, 1
    %p92 = scmp.ne.s32.totalorder %s87, %s89
    %p93 = scmp.eq.s32.totalorder %s11, 0
    %p94 = por %p92, %p93
    %p95 = scmp.ne.s32.totalorder %s87, %s89
    %p96 = scmp.eq.s32.totalorder %s16, 1
    %p97 = por %p95, %p96
    %p98 = scmp.ne.s32.totalorder %s89, %s90
    %p99 = scmp.eq.s32.totalorder %s16, 0
    %p100 = por %p98, %p99
    %p101 = scmp.ne.s32.totalorder %s89, %s90
    %p102 = scmp.eq.s32.totalorder %s17, 1
    %p103 = por %p101, %p102
    %p105 = scmp.ne.s32.totalorder %s90, %s104
    %p106 = scmp.eq.s32.totalorder %s17, 0
    %p107 = por %p105, %p106
    %s109 = sadd.s32 %s108, 1
    %p112 = scmp.eq.s32.totalorder %s11, 1
    %p113 = scmp.ne.s32.totalorder %s108, %s110
    %p114 = scmp.eq.s32.totalorder %s11, 0
    %p115 = por %p113, %p114
    %p116 = scmp.ne.s32.totalorder %s108, %s110
    %p117 = scmp.eq.s32.totalorder %s16, 1
    %p118 = por %p116, %p117
    %p119 = scmp.ne.s32.totalorder %s110, %s111
    %p120 = scmp.eq.s32.totalorder %s16, 0
    %p121 = por %p119, %p120
    %p122 = scmp.ne.s32.totalorder %s110, %s111
    %p123 = scmp.eq.s32.totalorder %s17, 1
    %p124 = por %p122, %p123
    %p126 = scmp.ne.s32.totalorder %s111, %s125
    %p127 = scmp.eq.s32.totalorder %s17, 0
    %p128 = por %p126, %p127
    %s129 = ssub.s32 %s11, %s18
    %p130 = scmp.eq.s32.totalorder %s129, 0
    %s132 = sadd.s32 %s131, 1
    %s133 = scalar_select %p130, %s131, %s132
    %p136 = pneg %p130
    %p137 = scmp.eq.s32.totalorder %s11, 1
    %p138 = por %p136, %p137
    %p139 = scmp.ne.s32.totalorder %s131, %s134
    %p140 = scmp.eq.s32.totalorder %s11, 0
    %p141 = por %p139, %p140
    %p142 = scmp.ne.s32.totalorder %s131, %s134
    %p143 = scmp.eq.s32.totalorder %s16, 1
    %p144 = por %p142, %p143
    %p145 = scmp.ne.s32.totalorder %s134, %s135
    %p146 = scmp.eq.s32.totalorder %s16, 0
    %p147 = por %p145, %p146
    %p148 = scmp.ne.s32.totalorder %s134, %s135
    %p149 = scmp.eq.s32.totalorder %s17, 1
    %p150 = por %p148, %p149
    %p152 = scmp.ne.s32.totalorder %s135, %s151
    %p153 = scmp.eq.s32.totalorder %s17, 0
    %p154 = por %p152, %p153
    %p155 = scmp.le.s32.totalorder 1, %s11
    %p156 = scmp.lt.s32.totalorder %s11, 3
    %p157 = pnand %p155, %p156
    %p158 = pneg %p157
    // Predicated region
    $region9: #{resnet_block_forward.1} parent=5 // pred_check
      _
    $region10: #{resnet_block_forward.1} parent=5 // pred_check_branch
      %160 = sbr.rel (%p157) target = $region12
    $region11: #{resnet_block_forward.1} parent=5 // pred_region
      %s161 = ssub.s32 %s11, 1
      // Predicated region
      $region13: #{resnet_block_forward.1} parent=11 // pred_check
        %p162 = pneg %p58
      $region14: #{resnet_block_forward.1} parent=11 // pred_check_branch
        %164 = sbr.rel (%p162) target = $region16
      $region15: #{resnet_block_forward.1} parent=11 // pred_region
        _
      $region16: #{resnet_block_forward.1} parent=11 // pred_fallthru
        _
      // Predicated region
      $region17: #{resnet_block_forward.1} parent=11 // pred_check
        %p165 = pneg %p79
      $region18: #{resnet_block_forward.1} parent=11 // pred_check_branch
        %167 = sbr.rel (%p165) target = $region20
      $region19: #{resnet_block_forward.1} parent=11 // pred_region
        _
      $region20: #{resnet_block_forward.1} parent=11 // pred_fallthru
        _
      // Predicated region
      $region21: #{resnet_block_forward.1} parent=11 // pred_check
        %p168 = pneg %p100
      $region22: #{resnet_block_forward.1} parent=11 // pred_check_branch
        %170 = sbr.rel (%p168) target = $region24
      $region23: #{resnet_block_forward.1} parent=11 // pred_region
        _
      $region24: #{resnet_block_forward.1} parent=11 // pred_fallthru
        _
      // Predicated region
      $region25: #{resnet_block_forward.1} parent=11 // pred_check
        %p171 = pneg %p121
      $region26: #{resnet_block_forward.1} parent=11 // pred_check_branch
        %173 = sbr.rel (%p171) target = $region28
      $region27: #{resnet_block_forward.1} parent=11 // pred_region
        _
      $region28: #{resnet_block_forward.1} parent=11 // pred_fallthru
        _
    $region12: #{resnet_block_forward.1} parent=5 // pred_fallthru
      _
    %p174 = scmp.lt.s32.totalorder %s11, 2
    // Predicated region
    $region29: #{resnet_block_forward.1} parent=5 // pred_check
      %p175 = pneg %p174
    $region30: #{resnet_block_forward.1} parent=5 // pred_check_branch
      %177 = sbr.rel (%p175) target = $region32
    $region31: #{resnet_block_forward.1} parent=5 // pred_region
      // Predicated region
      $region33: #{resnet_block_forward.1} parent=31 // pred_check
        %p178 = pneg %p31
      $region34: #{resnet_block_forward.1} parent=31 // pred_check_branch
        %180 = sbr.rel (%p178) target = $region36
      $region35: #{resnet_block_forward.1} parent=31 // pred_region
        %p181 = scmp.lt.s32.totalorder %s11, 1
        %s182 = scalar_select %p181, %s11, 1
        %s183 = smul.addr %s182, 2
        %s184 = smul.addr %s183, 4
        %s185 = scalar_lea.vmem %s0, %s184
      $region36: #{resnet_block_forward.1} parent=31 // pred_fallthru
        _
    $region32: #{resnet_block_forward.1} parent=5 // pred_fallthru
      _
    %p186 = scmp.le.s32.totalorder 1, %s11
    %p187 = scmp.lt.s32.totalorder %s11, 3
    %p188 = pnand %p186, %p187
    %p189 = pneg %p188
    // Predicated region
    $region37: #{resnet_block_forward.1} parent=5 // pred_check
      _
    $region38: #{resnet_block_forward.1} parent=5 // pred_check_branch
      %191 = sbr.rel (%p188) target = $region40
    $region39: #{resnet_block_forward.1} parent=5 // pred_region
      %s192 = ssub.s32 %s11, 1
      %p193 = scmp.lt.s32.totalorder %s16, 1
      %s194 = scalar_select %p193, %s16, 1
      %s195 = smul.addr %s194, 2
      %s196 = smul.addr %s195, 4
      %s197 = scalar_lea.vmem %s0, %s196
      %p198 = pneg %p37
      %p199 = pneg %p34
      %p200 = pneg %p58
      %p201 = pneg %p55
      %p202 = pneg %p79
      %p203 = pneg %p76
      %p204 = pneg %p100
      %p205 = pneg %p97
      %p206 = pneg %p121
      %p207 = pneg %p118
      %p208 = pneg %p147
      %p209 = pneg %p144
      %p210 = scmp.lt.s32.totalorder %s16, 1
      %s211 = scalar_select %p210, %s16, 1
      %s212 = smul.addr %s211, 2
      %s213 = smul.addr %s212, 4
      %s214 = scalar_lea.vmem %s5, %s213
      %p215 = scmp.lt.s32.totalorder %s16, 1
      %s216 = scalar_select %p215, %s16, 1
      %s217 = smul.addr %s216, 2
      %s218 = smul.addr %s217, 4
      %s219 = scalar_lea.vmem %s0, %s218
      %p220 = scmp.lt.s32.totalorder %s16, 1
      %s221 = scalar_select %p220, %s16, 1
      %s222 = smul.addr %s221, 2
      %s223 = smul.addr %s222, 4
      %s224 = scalar_lea.vmem %s5, %s223
      %v225 = vld [vmem:[%s219] sm:$0xff]
      %v226 = vlaneseq
      %v227 = vand.u32 %v226, 127
      %v228 = vadd.s32 %v227, 128
      %vm229 = vcmp.lt.s32.totalorder %v227, 0
      %v230 = vsub.s32 0, %v227
      %v231 = vsel %vm229, %v230, %v227
      %v232 = vshrl.u32 %v231, 4
      %v233 = vand.u32 %v231, 15
      %v234 = vsub.s32 0, %v233
      %v235 = vsel %vm229, %v234, %v233
      %vm236 = vcmp.lt.s32.totalorder %v228, 0
      %v237 = vsub.s32 0, %v228
      %v238 = vsel %vm236, %v237, %v228
      %v239 = vshrl.u32 %v238, 4
      %v240 = vand.u32 %v238, 15
      %v241 = vsub.s32 0, %v240
      %v242 = vsel %vm236, %v241, %v240
      %vm243 = vcmp.ne.s32.totalorder %v235, 0
      %vm244 = vcmp.ne.s32.totalorder %v242, 0
      %vm245 = vcmp.lt.s32.totalorder %v235, 0
      %vm246 = vcmp.lt.s32.totalorder %v242, 0
      %vm247 = vmand %vm245, %vm243
      %vm248 = vmand %vm246, %vm244
      %v249 = vadd.s32 %v235, 16
      %v250 = vadd.s32 %v242, 16
      %v251 = vsel %vm247, %v249, %v235
      %v252 = vsel %vm248, %v250, %v242
      %vm253 = vcmp.eq.s32.totalorder %v251, 0
      %vm254 = vcmp.eq.s32.totalorder %v252, 0
      %vm255 = vcmp.eq.s32.totalorder %v251, 15
      %vm256 = vcmp.eq.s32.totalorder %v252, 15
      %vm257 = vcmp.lt.s32.totalorder %v227, 16
      %vm258 = vcmp.lt.s32.totalorder %v228, 16
      %vm259 = vcmp.ge.s32.totalorder %v227, 240
      %vm260 = vcmp.ge.s32.totalorder %v228, 240
      %v262 = vcombine.high %v225, %v225
      %264 = vrot.lane.b32.xlu0 %v225, 16
      %v265 = vpop.permute.xlu0 %264
      %266 = vrot.lane.b32.xlu0 %v262, 16
      %v267 = vpop.permute.xlu0 %266
      %v268 = vsel %vm257, %v265, %v267
      %v269 = vsel %vm257, %v267, %v265
      %270 = vrot.lane.b32.xlu0 %v225, 112
      %v271 = vpop.permute.xlu0 %270
      %272 = vrot.lane.b32.xlu0 %v262, 112
      %v273 = vpop.permute.xlu0 %272
      %vm274 = vcmp.lt.s32.totalorder %v227, 112
      %v275 = vsel %vm274, %v271, %v273
      %v276 = vsel %vm274, %v273, %v271
      %v277 = vsel %vm257, 1, 0
      %v278 = vsel %vm258, 1, 0
      %vm279 = vcmp.eq.s32.totalorder %v277, 1
      %vm280 = vcmp.eq.s32.totalorder %v278, 1
      %v281 = vsel %vm279, %v275, %v269
      %v282 = vsel %vm280, %v276, %v268
      %v283 = vsel %vm259, 1, 0
      %v284 = vsel %vm260, 1, 0
      %vm285 = vcmp.eq.s32.totalorder %v283, 1
      %vm286 = vcmp.eq.s32.totalorder %v284, 1
      %v287 = vsel %vm285, %v269, %v275
      %v288 = vsel %vm286, %v268, %v276
      %289 = vrot.lane.b32.xlu0 %v281, 1
      %v290 = vpop.permute.xlu0 %289
      %291 = vrot.lane.b32.xlu0 %v282, 1
      %v292 = vpop.permute.xlu0 %291
      %vm293 = vcmp.lt.s32.totalorder %v227, 1
      %v294 = vsel %vm293, %v290, %v292
      %v295 = vsel %vm293, %v292, %v290
      %296 = vrot.lane.b32.xlu0 %v281, 127
      %v297 = vpop.permute.xlu0 %296
      %298 = vrot.lane.b32.xlu0 %v282, 127
      %v299 = vpop.permute.xlu0 %298
      %vm300 = vcmp.lt.s32.totalorder %v227, 127
      %v301 = vsel %vm300, %v297, %v299
      %v302 = vsel %vm300, %v299, %v297
      %v303 = vsel %vm253, 1, 0
      %v304 = vsel %vm254, 1, 0
      %vm305 = vcmp.eq.s32.totalorder %v303, 1
      %vm306 = vcmp.eq.s32.totalorder %v304, 1
      %v307 = vsel %vm305, %v301, %v295
      %v308 = vsel %vm306, %v302, %v294
      %v309 = vsel %vm255, 1, 0
      %v310 = vsel %vm256, 1, 0
      %vm311 = vcmp.eq.s32.totalorder %v309, 1
      %vm312 = vcmp.eq.s32.totalorder %v310, 1
      %v313 = vsel %vm311, %v295, %v301
      %v314 = vsel %vm312, %v294, %v302
      %315 = vrot.lane.b32.xlu0 %v225, 1
      %v316 = vpop.permute.xlu0 %315
      %317 = vrot.lane.b32.xlu0 %v262, 1
      %v318 = vpop.permute.xlu0 %317
      %v319 = vsel %vm293, %v316, %v318
      %v320 = vsel %vm293, %v318, %v316
      %321 = vrot.lane.b32.xlu0 %v225, 127
      %v322 = vpop.permute.xlu0 %321
      %323 = vrot.lane.b32.xlu0 %v262, 127
      %v324 = vpop.permute.xlu0 %323
      %v325 = vsel %vm300, %v322, %v324
      %v326 = vsel %vm300, %v324, %v322
      %v327 = vsel %vm305, %v325, %v320
      %v328 = vsel %vm306, %v326, %v319
      %v329 = vsel %vm311, %v320, %v325
      %v330 = vsel %vm312, %v319, %v326
      %331 = vrot.lane.b32.xlu0 %v287, 1
      %v332 = vpop.permute.xlu0 %331
      %333 = vrot.lane.b32.xlu0 %v288, 1
      %v334 = vpop.permute.xlu0 %333
      %v335 = vsel %vm293, %v332, %v334
      %v336 = vsel %vm293, %v334, %v332
      %337 = vrot.lane.b32.xlu0 %v287, 127
      %v338 = vpop.permute.xlu0 %337
      %339 = vrot.lane.b32.xlu0 %v288, 127
      %v340 = vpop.permute.xlu0 %339
      %v341 = vsel %vm300, %v338, %v340
      %v342 = vsel %vm300, %v340, %v338
      %v343 = vsel %vm305, %v341, %v336
      %v344 = vsel %vm306, %v342, %v335
      %v345 = vsel %vm311, %v336, %v341
      %v346 = vsel %vm312, %v335, %v342
      %v349 = vrot.slane %v281, 4
      %v350 = vrot.slane %v282, 4
      %v355 = vrot.slane %v327, 4
      %v356 = vrot.slane %v328, 4
      %v361 = vrot.slane %v329, 4
      %v362 = vrot.slane %v330, 4
      %v367 = vrot.slane %v287, 4
      %v368 = vrot.slane %v288, 4
      %vm371 = vcmask 1043456
      %v372 = vsel %vm371, %v307, %v349
      %v373 = vsel %vm371, %v308, %v350
      %v374 = vsel %vm371, %v313, %v355
      %v375 = vsel %vm371, %v314, %v356
      %v376 = vsel %vm371, %v225, %v361
      %v377 = vsel %vm371, %v262, %v362
      %v378 = vsel %vm371, %v343, %v367
      %v379 = vsel %vm371, %v344, %v368
      %v380 = vld [vmem:[%s1] sm:$0xf]
      %v381 = vld [vmem:[%s2] sm:$0xf]
      %383 = vset.pattern.permute.xlu0 0
      %384 = vperm.xlu0 %383, %v381
      %v385 = vpop.permute.xlu0 %384
      %vm387 = vcmask 293888
      %v389 = vsel %vm387, %v380, 0
      %v392 = vsel %vm371, %v345, 0
      %v395 = vsel %vm371, %v346, 0
      %397 = vmatprep.subr.mxu0 0.0
      %398 = vmatpush1.msra.mxu0 0.0
      %399 = vmatprep.subr.mxu0 0.0
      %400 = vmatpush1.msra.mxu0 0.0
      %401 = vmatprep.subr.mxu0 0.0
      %402 = vmatpush1.msra.mxu0 0.0
      %403 = vmatprep.subr.mxu0 0.0
      %404 = vmatpush1.msra.mxu0 0.0
      %405 = vmatprep.subr.mxu0 0.0
      %406 = vmatpush1.msra.mxu0 0.0
      %407 = vmatprep.subr.mxu0 0.0
      %408 = vmatpush1.msra.mxu0 0.0
      %409 = vmatprep.subr.mxu0 0.0
      %410 = vmatpush1.msra.mxu0 0.0
      %411 = vmatprep.subr.mxu0 0.0
      %412 = vmatpush1.msra.mxu0 0.0
      %413 = vmatprep.subr.mxu0 0.0
      %414 = vmatpush1.msra.mxu0 0.0
      %415 = vmatprep.subr.mxu0 0.0
      %416 = vmatpush1.msra.mxu0 0.0
      %417 = vmatprep.subr.mxu0 0.0
      %418 = vmatpush1.msra.mxu0 0.0
      %419 = vmatprep.subr.mxu0 %v395
      %420 = vmatpush1.msra.mxu0 %v392
      %421 = vmatprep.subr.mxu0 %v379
      %422 = vmatpush1.msra.mxu0 %v378
      %423 = vmatprep.subr.mxu0 %v377
      %424 = vmatpush1.msra.mxu0 %v376
      %425 = vmatprep.subr.mxu0 %v375
      %426 = vmatpush1.msra.mxu0 %v374
      %427 = vmatprep.subr.mxu0 %v373
      %428 = vmatpush1.msra.mxu0 %v372
      %429 = vmatprep.subr.mxu0 0.0
      %430 = vmatpush2.msra.mxu0 0.0
      %431 = vmatprep.subr.mxu0 0.0
      %432 = vmatpush2.msra.mxu0 0.0
      %433 = vmatprep.subr.mxu0 0.0
      %434 = vmatpush2.msra.mxu0 0.0
      %435 = vmatprep.subr.mxu0 0.0
      %436 = vmatpush2.msra.mxu0 0.0
      %437 = vmatprep.subr.mxu0 0.0
      %438 = vmatpush2.msra.mxu0 0.0
      %439 = vmatprep.subr.mxu0 0.0
      %440 = vmatpush2.msra.mxu0 0.0
      %441 = vmatprep.subr.mxu0 0.0
      %442 = vmatpush2.msra.mxu0 0.0
      %443 = vmatprep.subr.mxu0 0.0
      %444 = vmatpush2.msra.mxu0 0.0
      %445 = vmatprep.subr.mxu0 0.0
      %446 = vmatpush2.msra.mxu0 0.0
      %447 = vmatprep.subr.mxu0 0.0
      %448 = vmatpush2.msra.mxu0 0.0
      %449 = vmatprep.subr.mxu0 0.0
      %450 = vmatpush2.msra.mxu0 0.0
      %451 = vmatprep.subr.mxu0 0.0
      %452 = vmatpush2.msra.mxu0 0.0
      %453 = vmatprep.subr.mxu0 0.0
      %454 = vmatpush2.msra.mxu0 0.0
      %455 = vmatprep.subr.mxu0 0.0
      %456 = vmatpush2.msra.mxu0 0.0
      %457 = vmatprep.subr.mxu0 0.0
      %458 = vmatpush2.msra.mxu0 0.0
      %459 = vmatprep.subr.mxu0 0.0
      %460 = vmatpush2.msra.mxu0 0.0
      %461 = vmatprep.mubr.f32.mxu0 0.0
      %462 = vmatmul.mubr.f32.gmra.mxu0 %v389
      %v463 = vpop.f32.mrf.mxu0
      %v464 = vadd.f32 %v385, %v463
      %v465 = vpop.f32.mrf.mxu0
      %v466 = vadd.f32 %v385, %v465
      %467 = vdwg.mxu0
      %v468 = vsel %vm371, %v464, 0.0
      %v469 = vsel %vm371, %v466, 0.0
      %v470 = vadd.f32 %v468, %v469
      %471 = vadd.xlane.f32.xlu0 %v470
      %v472 = vpop.xlane.xlu0 %471
      %v473 = vrcp.pop 256.0
      %v474 = vmul.f32 %v472, %v473
      %v475 = vsub.f32 %v464, %v474
      %v476 = vsub.f32 %v466, %v474
      %v477 = vmul.f32 %v475, %v475
      %v478 = vmul.f32 %v476, %v476
      %v479 = vsel %vm371, %v477, 0.0
      %v480 = vsel %vm371, %v478, 0.0
      %v481 = vadd.f32 %v479, %v480
      %482 = vadd.xlane.f32.xlu0 %v481
      %v483 = vpop.xlane.xlu0 %482
      %v484 = vmul.f32 %v483, %v473
      %v485 = vadd.f32 %v484, 1e-05
      %v486 = vrsqrt.pop %v485
      %v487 = vmul.f32 %v475, %v486
      %v488 = vmul.f32 %v476, %v486
      %v489 = vmax.f32 %v487, 0.0
      %v490 = vmax.f32 %v488, 0.0
      %491 = vrot.lane.b32.xlu0 %v489, 16
      %v492 = vpop.permute.xlu0 %491
      %493 = vrot.lane.b32.xlu0 %v490, 16
      %v494 = vpop.permute.xlu0 %493
      %v495 = vsel %vm257, %v492, %v494
      %v496 = vsel %vm257, %v494, %v492
      %497 = vrot.lane.b32.xlu0 %v489, 112
      %v498 = vpop.permute.xlu0 %497
      %499 = vrot.lane.b32.xlu0 %v490, 112
      %v500 = vpop.permute.xlu0 %499
      %v501 = vsel %vm274, %v498, %v500
      %v502 = vsel %vm274, %v500, %v498
      %v503 = vsel %vm279, %v501, %v496
      %v504 = vsel %vm280, %v502, %v495
      %v505 = vsel %vm285, %v496, %v501
      %v506 = vsel %vm286, %v495, %v502
      %507 = vrot.lane.b32.xlu0 %v503, 1
      %v508 = vpop.permute.xlu0 %507
      %509 = vrot.lane.b32.xlu0 %v504, 1
      %v510 = vpop.permute.xlu0 %509
      %v511 = vsel %vm293, %v508, %v510
      %v512 = vsel %vm293, %v510, %v508
      %513 = vrot.lane.b32.xlu0 %v503, 127
      %v514 = vpop.permute.xlu0 %513
      %515 = vrot.lane.b32.xlu0 %v504, 127
      %v516 = vpop.permute.xlu0 %515
      %v517 = vsel %vm300, %v514, %v516
      %v518 = vsel %vm300, %v516, %v514
      %v519 = vsel %vm305, %v517, %v512
      %v520 = vsel %vm306, %v518, %v511
      %v521 = vsel %vm311, %v512, %v517
      %v522 = vsel %vm312, %v511, %v518
      %523 = vrot.lane.b32.xlu0 %v489, 1
      %v524 = vpop.permute.xlu0 %523
      %525 = vrot.lane.b32.xlu0 %v490, 1
      %v526 = vpop.permute.xlu0 %525
      %v527 = vsel %vm293, %v524, %v526
      %v528 = vsel %vm293, %v526, %v524
      %529 = vrot.lane.b32.xlu0 %v489, 127
      %v530 = vpop.permute.xlu0 %529
      %531 = vrot.lane.b32.xlu0 %v490, 127
      %v532 = vpop.permute.xlu0 %531
      %v533 = vsel %vm300, %v530, %v532
      %v534 = vsel %vm300, %v532, %v530
      %v535 = vsel %vm305, %v533, %v528
      %v536 = vsel %vm306, %v534, %v527
      %v537 = vsel %vm311, %v528, %v533
      %v538 = vsel %vm312, %v527, %v534
      %539 = vrot.lane.b32.xlu0 %v505, 1
      %v540 = vpop.permute.xlu0 %539
      %541 = vrot.lane.b32.xlu0 %v506, 1
      %v542 = vpop.permute.xlu0 %541
      %v543 = vsel %vm293, %v540, %v542
      %v544 = vsel %vm293, %v542, %v540
      %545 = vrot.lane.b32.xlu0 %v505, 127
      %v546 = vpop.permute.xlu0 %545
      %547 = vrot.lane.b32.xlu0 %v506, 127
      %v548 = vpop.permute.xlu0 %547
      %v549 = vsel %vm300, %v546, %v548
      %v550 = vsel %vm300, %v548, %v546
      %v551 = vsel %vm305, %v549, %v544
      %v552 = vsel %vm306, %v550, %v543
      %v553 = vsel %vm311, %v544, %v549
      %v554 = vsel %vm312, %v543, %v550
      %v557 = vrot.slane %v503, 4
      %v558 = vrot.slane %v504, 4
      %v563 = vrot.slane %v535, 4
      %v564 = vrot.slane %v536, 4
      %v569 = vrot.slane %v537, 4
      %v570 = vrot.slane %v538, 4
      %v575 = vrot.slane %v505, 4
      %v576 = vrot.slane %v506, 4
      %v579 = vsel %vm371, %v519, %v557
      %v580 = vsel %vm371, %v520, %v558
      %v581 = vsel %vm371, %v521, %v563
      %v582 = vsel %vm371, %v522, %v564
      %v583 = vsel %vm371, %v489, %v569
      %v584 = vsel %vm371, %v490, %v570
      %v585 = vsel %vm371, %v551, %v575
      %v586 = vsel %vm371, %v552, %v576
      %v587 = vld [vmem:[%s3] sm:$0xf]
      %v588 = vld [vmem:[%s4] sm:$0xf]
      %590 = vset.pattern.permute.xlu0 0
      %591 = vperm.xlu0 %590, %v588
      %v592 = vpop.permute.xlu0 %591
      %v595 = vsel %vm387, %v587, 0
      %v598 = vsel %vm371, %v553, 0
      %v601 = vsel %vm371, %v554, 0
      %603 = vmatprep.subr.mxu0 0.0
      %604 = vmatpush1.msra.mxu0 0.0
      %605 = vmatprep.subr.mxu0 0.0
      %606 = vmatpush1.msra.mxu0 0.0
      %607 = vmatprep.subr.mxu0 0.0
      %608 = vmatpush1.msra.mxu0 0.0
      %609 = vmatprep.subr.mxu0 0.0
      %610 = vmatpush1.msra.mxu0 0.0
      %611 = vmatprep.subr.mxu0 0.0
      %612 = vmatpush1.msra.mxu0 0.0
      %613 = vmatprep.subr.mxu0 0.0
      %614 = vmatpush1.msra.mxu0 0.0
      %615 = vmatprep.subr.mxu0 0.0
      %616 = vmatpush1.msra.mxu0 0.0
      %617 = vmatprep.subr.mxu0 0.0
      %618 = vmatpush1.msra.mxu0 0.0
      %619 = vmatprep.subr.mxu0 0.0
      %620 = vmatpush1.msra.mxu0 0.0
      %621 = vmatprep.subr.mxu0 0.0
      %622 = vmatpush1.msra.mxu0 0.0
      %623 = vmatprep.subr.mxu0 0.0
      %624 = vmatpush1.msra.mxu0 0.0
      %625 = vmatprep.subr.mxu0 %v601
      %626 = vmatpush1.msra.mxu0 %v598
      %627 = vmatprep.subr.mxu0 %v586
      %628 = vmatpush1.msra.mxu0 %v585
      %629 = vmatprep.subr.mxu0 %v584
      %630 = vmatpush1.msra.mxu0 %v583
      %631 = vmatprep.subr.mxu0 %v582
      %632 = vmatpush1.msra.mxu0 %v581
      %633 = vmatprep.subr.mxu0 %v580
      %634 = vmatpush1.msra.mxu0 %v579
      %635 = vmatprep.subr.mxu0 0.0
      %636 = vmatpush2.msra.mxu0 0.0
      %637 = vmatprep.subr.mxu0 0.0
      %638 = vmatpush2.msra.mxu0 0.0
      %639 = vmatprep.subr.mxu0 0.0
      %640 = vmatpush2.msra.mxu0 0.0
      %641 = vmatprep.subr.mxu0 0.0
      %642 = vmatpush2.msra.mxu0 0.0
      %643 = vmatprep.subr.mxu0 0.0
      %644 = vmatpush2.msra.mxu0 0.0
      %645 = vmatprep.subr.mxu0 0.0
      %646 = vmatpush2.msra.mxu0 0.0
      %647 = vmatprep.subr.mxu0 0.0
      %648 = vmatpush2.msra.mxu0 0.0
      %649 = vmatprep.subr.mxu0 0.0
      %650 = vmatpush2.msra.mxu0 0.0
      %651 = vmatprep.subr.mxu0 0.0
      %652 = vmatpush2.msra.mxu0 0.0
      %653 = vmatprep.subr.mxu0 0.0
      %654 = vmatpush2.msra.mxu0 0.0
      %655 = vmatprep.subr.mxu0 0.0
      %656 = vmatpush2.msra.mxu0 0.0
      %657 = vmatprep.subr.mxu0 0.0
      %658 = vmatpush2.msra.mxu0 0.0
      %659 = vmatprep.subr.mxu0 0.0
      %660 = vmatpush2.msra.mxu0 0.0
      %661 = vmatprep.subr.mxu0 0.0
      %662 = vmatpush2.msra.mxu0 0.0
      %663 = vmatprep.subr.mxu0 0.0
      %664 = vmatpush2.msra.mxu0 0.0
      %665 = vmatprep.subr.mxu0 0.0
      %666 = vmatpush2.msra.mxu0 0.0
      %667 = vmatprep.mubr.f32.mxu0 0.0
      %668 = vmatmul.mubr.f32.gmra.mxu0 %v595
      %v669 = vpop.f32.mrf.mxu0
      %v670 = vadd.f32 %v592, %v669
      %v671 = vpop.f32.mrf.mxu0
      %v672 = vadd.f32 %v592, %v671
      %673 = vdwg.mxu0
      %v674 = vsel %vm371, %v670, 0.0
      %v675 = vsel %vm371, %v672, 0.0
      %v676 = vadd.f32 %v674, %v675
      %677 = vadd.xlane.f32.xlu0 %v676
      %v678 = vpop.xlane.xlu0 %677
      %v679 = vmul.f32 %v678, %v473
      %v680 = vsub.f32 %v670, %v679
      %v681 = vsub.f32 %v672, %v679
      %v682 = vmul.f32 %v680, %v680
      %v683 = vmul.f32 %v681, %v681
      %v684 = vsel %vm371, %v682, 0.0
      %v685 = vsel %vm371, %v683, 0.0
      %v686 = vadd.f32 %v684, %v685
      %687 = vadd.xlane.f32.xlu0 %v686
      %v688 = vpop.xlane.xlu0 %687
      %v689 = vmul.f32 %v688, %v473
      %v690 = vadd.f32 %v689, 1e-05
      %v691 = vrsqrt.pop %v690
      %v692 = vmul.f32 %v680, %v691
      %v693 = vmul.f32 %v681, %v691
      %v696 = vcombine.low %v692, %v693
      %v698 = vadd.f32 %v225, %v696
      %699 = vst [vmem:[%s224] sm:$0xff] %v698
      %p700 = scmp.lt.s32.totalorder %s16, 1
      %s701 = scalar_select %p700, %s16, 1
      %s702 = smul.addr %s701, 2
      %s703 = smul.addr %s702, 4
      %s704 = scalar_lea.vmem %s5, %s703
      // Predicated region
      $region41: #{resnet_block_forward.1} parent=39 // pred_check
        %p705 = pneg %p144
      $region42: #{resnet_block_forward.1} parent=39 // pred_check_branch
        %707 = sbr.rel (%p705) target = $region44
      $region43: #{resnet_block_forward.1} parent=39 // pred_region
        _
      $region44: #{resnet_block_forward.1} parent=39 // pred_fallthru
        _
    $region40: #{resnet_block_forward.1} parent=5 // pred_fallthru
      _
    %p708 = scmp.le.s32.totalorder 2, %s11
    // Predicated region
    $region45: #{resnet_block_forward.1} parent=5 // pred_check
      %p709 = pneg %p708
    $region46: #{resnet_block_forward.1} parent=5 // pred_check_branch
      %711 = sbr.rel (%p709) target = $region48
    $region47: #{resnet_block_forward.1} parent=5 // pred_region
      %s712 = ssub.s32 %s11, 2
      // Predicated region
      $region49: #{resnet_block_forward.1} parent=47 // pred_check
        %p713 = pneg %p150
      $region50: #{resnet_block_forward.1} parent=47 // pred_check_branch
        %715 = sbr.rel (%p713) target = $region52
      $region51: #{resnet_block_forward.1} parent=47 // pred_region
        %p716 = scmp.lt.s32.totalorder %s17, 1
        %s717 = scalar_select %p716, %s17, 1
        %s718 = smul.addr %s717, 2
        %s719 = smul.addr %s718, 4
        %s720 = scalar_lea.vmem %s5, %s719
      $region52: #{resnet_block_forward.1} parent=47 // pred_fallthru
        _
    $region48: #{resnet_block_forward.1} parent=5 // pred_fallthru
      _
  $region6: #{resnet_block_forward.1} parent=0 // loop_footer
    %s15 = sadd.s32 1, %s11
  $region7: #{resnet_block_forward.1} parent=0 // loop_footer_branch
    %10 = sbr.rel target = $region3
  $region8: #{resnet_block_forward.1} parent=0 // loop_exit
    _

</llo_original>
